<compile_context>
chip_gen: v6e
topology: v6e:2x2x1
jax: 0.10.0
libtpu: 0.0.40
codegen_flags: <defaults>
</compile_context>

<pallas_src>
import jax
import jax.numpy as jnp
from jax.experimental import pallas as pl
from jax.experimental.pallas import tpu as pltpu

BN_EPS = 1e-5


def mlp_kernel(x_ref, w1_ref, b1_ref, w2_ref, b2_ref, o_ref):
    # x_ref: (TB, D) tile in its natural layout.  Cast to bf16 on the VPU
    # (hidden under the DMA) and contract against the folded fc1 weight with
    # the batch dim kept in LANES: (H, D) x (TB, D)^T -> (H, TB), f32 acc.
    xb = x_ref[...].astype(jnp.bfloat16)
    h = jax.lax.dot_general(
        w1_ref[...], xb,
        dimension_numbers=(((1,), (1,)), ((), ())),
        preferred_element_type=jnp.float32)
    h = jnp.maximum(h + b1_ref[...], 0.0)          # folded BN bias + ReLU
    # Dropout(p=0.2): identity in eval mode.
    # fc2: broadcast-multiply + 16-sublane reduce -> lane-dense (1, TB).
    y = jnp.sum(h * w2_ref[...], axis=0, keepdims=True) + b2_ref[0]
    # Numerically-stable sigmoid (exp runs on the EUP slot; no overflow).
    e = jnp.exp(-jnp.abs(y))
    o_ref[...] = jnp.where(y >= 0.0, 1.0 / (1.0 + e), e / (1.0 + e))


def prepare_params(params, eps=BN_EPS):
    """Fold eval-mode BatchNorm into fc1 and lay params out for the kernel."""
    w1, b1, gamma, beta, running_mean, running_var, w2, b2 = params
    scale = gamma * jax.lax.rsqrt(running_var + eps)                  # (H,)
    w1p = (w1 * scale[:, None]).astype(jnp.bfloat16)                  # (H, D) bf16
    b1p = ((b1 - running_mean) * scale + beta)[:, None]               # (H, 1)
    w2c = w2.reshape(-1, 1).astype(jnp.float32)                       # (H, 1)
    b2s = b2.reshape(-1).astype(jnp.float32)                          # (1,) SMEM scalar
    return w1p, b1p.astype(jnp.float32), w2c, b2s


def mlp_forward(x, prepared, tb=16384):
    """x: (B, D) float (f32 or bf16), natural layout; returns (B, 1) float32."""
    w1p, b1p, w2c, b2s = prepared
    B, D = x.shape
    H = w1p.shape[0]

    # --- batch-tile selection (no host-side relayout / cast / pad of x) -----
    # tb must be a multiple of 128 (lane dim of the output block, sublane dim
    # of the x block) unless it equals the full batch (full-array blocks are
    # always legal).  Partial trailing blocks are safe here: all math is
    # per-lane (per batch element), so out-of-bounds lanes never contaminate
    # valid ones, and Pallas masks out-of-bounds output writes.
    if B < 128:
        tb = B
    else:
        tb = max(128, (min(tb, B) // 128) * 128)
        # keep >= 2 grid steps when the batch allows it so both v7x
        # TensorCores get work under the "parallel" grid axis.
        if pl.cdiv(B, tb) < 2 and B >= 256:
            tb = max(128, (B // 2 // 128) * 128)
    grid = pl.cdiv(B, tb)

    # VMEM budget at tb=16384 (f32 x): 2 MiB x-tile x2 (double buffer)
    # + ~1-3 MiB f32 hidden/temps -> well under the 16 MiB scoped default on
    # v5e and the 32 MiB default on v6e/v7x; no vmem_limit_bytes bump needed.
    out = pl.pallas_call(
        mlp_kernel,
        out_shape=jax.ShapeDtypeStruct((1, B), jnp.float32),
        grid=(grid,),
        in_specs=[
            pl.BlockSpec((tb, D), lambda i: (i, 0)),                # x, streamed as-is
            pl.BlockSpec((H, D), lambda i: (0, 0)),                 # folded fc1 weight (bf16)
            pl.BlockSpec((H, 1), lambda i: (0, 0)),                 # folded fc1 bias
            pl.BlockSpec((H, 1), lambda i: (0, 0)),                 # fc2 weight column
            pl.BlockSpec(memory_space=pltpu.MemorySpace.SMEM),      # fc2 bias scalar
        ],
        out_specs=pl.BlockSpec((1, tb), lambda i: (0, i)),
        compiler_params=pltpu.CompilerParams(
            dimension_semantics=("parallel",)),
    )(x, w1p, b1p, w2c, b2s)

    # (1, B) -> (B, 1): same data order, effectively a free reshape.
    return out.T


def init_params(key, input_size, hidden_size=16):
    k1, k2, k3, k4, k5, k6, k7 = jax.random.split(key, 7)
    lim1 = 1.0 / jnp.sqrt(input_size)
    w1 = jax.random.uniform(k1, (hidden_size, input_size), jnp.float32, -lim1, lim1)
    b1 = jax.random.uniform(k2, (hidden_size,), jnp.float32, -lim1, lim1)
    lim2 = 1.0 / jnp.sqrt(hidden_size)
    w2 = jax.random.uniform(k3, (1, hidden_size), jnp.float32, -lim2, lim2)
    b2 = jax.random.uniform(k4, (1,), jnp.float32, -lim2, lim2)
    # Non-trivial BatchNorm running stats / affine params to exercise the fold.
    gamma = jax.random.uniform(k5, (hidden_size,), jnp.float32, 0.5, 1.5)
    beta = 0.1 * jax.random.normal(k6, (hidden_size,), jnp.float32)
    running_mean = 0.1 * jax.random.normal(k7, (hidden_size,), jnp.float32)
    running_var = jnp.linspace(0.5, 1.5, hidden_size, dtype=jnp.float32)
    return (w1, b1, gamma, beta, running_mean, running_var, w2, b2)


def reference_forward(x, params):
    """Full-precision torch-equivalent eval forward (BN not folded)."""
    w1, b1, gamma, beta, running_mean, running_var, w2, b2 = params
    h = x @ w1.T + b1
    h = (h - running_mean) / jnp.sqrt(running_var + BN_EPS) * gamma + beta
    h = jnp.maximum(h, 0.0)
    y = h @ w2.T + b2
    return jax.nn.sigmoid(y)


def reference_forward_prepared(x, prepared):
    """Same math as the kernel (BN folded, bf16-rounded x / fc1 weight)."""
    w1p, b1p, w2c, b2s = prepared
    xb = x.astype(jnp.bfloat16).astype(jnp.float32)
    h = jnp.maximum(xb @ w1p.astype(jnp.float32).T + b1p.T, 0.0)     # (B, H)
    y = h @ w2c + b2s                                                # (B, 1)
    return jax.nn.sigmoid(y)


if __name__ == "__main__":
    key = jax.random.PRNGKey(0)
    kx, kp = jax.random.split(key)

    # Small but grid-exercising shape: batch=256 -> two 128-row grid steps.
    batch, input_size, hidden = 256, 32, 16
    x = jax.random.normal(kx, (batch, input_size), jnp.float32)
    params = init_params(kp, input_size, hidden)
    prepared = prepare_params(params)

    out = jax.block_until_ready(mlp_forward(x, prepared))
    assert out.shape == (batch, 1), out.shape

    # Tight check against the exact math the kernel claims to implement.
    ref_exact = reference_forward_prepared(x, prepared)
    assert jnp.allclose(out, ref_exact, atol=1e-4, rtol=1e-4), (out, ref_exact)

    # Loose check against the unfused full-f32 torch-equivalent forward
    # (difference is only bf16 rounding of x / fc1 weights).
    ref_full = reference_forward(x, params)
    assert jnp.allclose(out, ref_full, atol=5e-3, rtol=5e-2), (out, ref_full)

    print("KERNEL_OK")
</pallas_src>

<mosaic_0001>
module attributes {stable_mosaic.version = 11 : i64} {
  func.func @mlp_kernel(%arg0: i32, %arg1: memref<128x32xf32, #tpu.memory_space<vmem>>, %arg2: memref<16x32xbf16, #tpu.memory_space<vmem>>, %arg3: memref<16x1xf32, #tpu.memory_space<vmem>>, %arg4: memref<16x1xf32, #tpu.memory_space<vmem>>, %arg5: memref<1xf32, #tpu.memory_space<smem>>, %arg6: memref<1x128xf32, #tpu.memory_space<vmem>>) attributes {dimension_semantics = [#tpu.dimension_semantics<parallel>], iteration_bounds = array<i64: 2>, scalar_prefetch = 0 : i64, scratch_operands = 0 : i64, tpu.core_type = #tpu.core_type<tc>, window_params = [{transform_indices = @transform_0, window_bounds = array<i64: 128, 32>}, {pipeline_mode = #tpu.pipeline_mode<synchronous>, transform_indices = @transform_1, window_bounds = array<i64: 16, 32>}, {pipeline_mode = #tpu.pipeline_mode<synchronous>, transform_indices = @transform_2, window_bounds = array<i64: 16, 1>}, {pipeline_mode = #tpu.pipeline_mode<synchronous>, transform_indices = @transform_3, window_bounds = array<i64: 16, 1>}, {transform_indices = @transform_4, window_bounds = array<i64: 1>}, {transform_indices = @transform_5, window_bounds = array<i64: 1, 128>}]} {
    %c0 = arith.constant 0 : index
    %c0_0 = arith.constant 0 : index
    %0 = vector.load %arg1[%c0, %c0_0] : memref<128x32xf32, #tpu.memory_space<vmem>>, vector<128x32xf32>
    %1 = arith.truncf %0 : vector<128x32xf32> to vector<128x32xbf16>
    %c0_1 = arith.constant 0 : index
    %c0_2 = arith.constant 0 : index
    %2 = vector.load %arg2[%c0_1, %c0_2] : memref<16x32xbf16, #tpu.memory_space<vmem>>, vector<16x32xbf16>
    %cst = arith.constant dense<0.000000e+00> : vector<16x128xf32>
    %3 = tpu.matmul %2, %1, %cst {dimension_numbers = #tpu.dot_dimension_numbers<[1], [1], [0], [0], [0, 0, 1, 0], [], []>} : vector<16x32xbf16>, vector<128x32xbf16>, vector<16x128xf32> -> vector<16x128xf32>
    %c0_3 = arith.constant 0 : index
    %c0_4 = arith.constant 0 : index
    %4 = vector.load %arg3[%c0_3, %c0_4] : memref<16x1xf32, #tpu.memory_space<vmem>>, vector<16x1xf32>
    %5 = vector.broadcast %4 : vector<16x1xf32> to vector<16x128xf32>
    %6 = arith.addf %3, %5 : vector<16x128xf32>
    %cst_5 = arith.constant 0.000000e+00 : f32
    %7 = vector.broadcast %cst_5 : f32 to vector<16x128xf32>
    %8 = arith.maximumf %6, %7 : vector<16x128xf32>
    %c0_6 = arith.constant 0 : index
    %c0_7 = arith.constant 0 : index
    %9 = vector.load %arg4[%c0_6, %c0_7] : memref<16x1xf32, #tpu.memory_space<vmem>>, vector<16x1xf32>
    %10 = vector.broadcast %9 : vector<16x1xf32> to vector<16x128xf32>
    %11 = arith.mulf %8, %10 : vector<16x128xf32>
    %cst_8 = arith.constant dense<0.000000e+00> : vector<128xf32>
    %12 = vector.multi_reduction <add>, %11, %cst_8 [0] : vector<16x128xf32> to vector<128xf32>
    %13 = vector.shape_cast %12 : vector<128xf32> to vector<1x128xf32>
    %c0_9 = arith.constant 0 : index
    %14 = memref.load %arg5[%c0_9] : memref<1xf32, #tpu.memory_space<smem>>
    %15 = vector.broadcast %14 : f32 to vector<1x128xf32>
    %16 = arith.addf %13, %15 : vector<1x128xf32>
    %17 = math.absf %16 : vector<1x128xf32>
    %cst_10 = arith.constant 0.000000e+00 : f32
    %18 = vector.broadcast %cst_10 : f32 to vector<1x128xf32>
    %19 = arith.subf %18, %17 : vector<1x128xf32>
    %20 = math.exp %19 : vector<1x128xf32>
    %cst_11 = arith.constant 0.000000e+00 : f32
    %21 = vector.broadcast %cst_11 : f32 to vector<1x128xf32>
    %22 = arith.cmpf oge, %16, %21 : vector<1x128xf32>
    %cst_12 = arith.constant 1.000000e+00 : f32
    %23 = vector.broadcast %cst_12 : f32 to vector<1x128xf32>
    %24 = arith.addf %23, %20 : vector<1x128xf32>
    %cst_13 = arith.constant 1.000000e+00 : f32
    %25 = vector.broadcast %cst_13 : f32 to vector<1x128xf32>
    %26 = arith.divf %25, %24 : vector<1x128xf32>
    %cst_14 = arith.constant 1.000000e+00 : f32
    %27 = vector.broadcast %cst_14 : f32 to vector<1x128xf32>
    %28 = arith.addf %27, %20 : vector<1x128xf32>
    %29 = arith.divf %20, %28 : vector<1x128xf32>
    %30 = arith.select %22, %26, %29 : vector<1x128xi1>, vector<1x128xf32>
    %c0_15 = arith.constant 0 : index
    %c0_16 = arith.constant 0 : index
    %31 = vector.load %arg6[%c0_15, %c0_16] : memref<1x128xf32, #tpu.memory_space<vmem>>, vector<1x128xf32>
    tpu.vector_store %arg6[%c0_15, %c0_16], %30 {strides = array<i32>} : memref<1x128xf32, #tpu.memory_space<vmem>>, vector<1x128xf32>,
    return
  }
  func.func @transform_0(%arg0: i32) -> (i32, i32) {
    %c0_i32 = arith.constant 0 : i32
    %c0_i32_0 = arith.constant 0 : i32
    return %arg0, %c0_i32 : i32, i32
  }
  func.func @transform_1(%arg0: i32) -> (i32, i32) {
    %c0_i32 = arith.constant 0 : i32
    %c0_i32_0 = arith.constant 0 : i32
    %c0_i32_1 = arith.constant 0 : i32
    return %c0_i32, %c0_i32_0 : i32, i32
  }
  func.func @transform_2(%arg0: i32) -> (i32, i32) {
    %c0_i32 = arith.constant 0 : i32
    %c0_i32_0 = arith.constant 0 : i32
    %c0_i32_1 = arith.constant 0 : i32
    return %c0_i32, %c0_i32_0 : i32, i32
  }
  func.func @transform_3(%arg0: i32) -> (i32, i32) {
    %c0_i32 = arith.constant 0 : i32
    %c0_i32_0 = arith.constant 0 : i32
    %c0_i32_1 = arith.constant 0 : i32
    return %c0_i32, %c0_i32_0 : i32, i32
  }
  func.func @transform_4(%arg0: i32) -> i32 {
    %c0_i32 = arith.constant 0 : i32
    %c0_i32_0 = arith.constant 0 : i32
    return %c0_i32 : i32
  }
  func.func @transform_5(%arg0: i32) -> (i32, i32) {
    %c0_i32 = arith.constant 0 : i32
    %c0_i32_0 = arith.constant 0 : i32
    return %c0_i32, %arg0 : i32, i32
  }
}

</mosaic_0001>

<llo_original>
// kernel: tpu_custom_call.1
$region0: #{tpu_custom_call.1}
  #allocation0 [shape = 'u32[]', space=smem, size = 0x4, offset = 0x4, fixed_abs, tag = 'smem constant byte address 0x4 - core index']
  #allocation1 [shape = 'u32[144,128]{1,0:T(1,128)}', space=vmem, size = 0x12000, scoped, tag = 'internal scratch']
  #allocation2 [shape = 'f32[1]{0:T(128)S(6)}', space=smem, size = 0x200, scoped, tag = 'scoped memory for tpu_custom_call.1']
  %s0 = inlined_call_operand.vmem [shape: f32[256,32], index: 0, kind: input, shape index: {}]
  %s1 = inlined_call_operand.vmem [shape: bf16[16,32], index: 1, kind: input, shape index: {}]
  %s2 = inlined_call_operand.vmem [shape: f32[16,1], index: 2, kind: input, shape index: {}]
  %s3 = inlined_call_operand.vmem [shape: f32[16,1], index: 3, kind: input, shape index: {}]
  %s4 = inlined_call_operand.<no memory space> [shape: f32[1], index: 4, kind: input, shape index: {}]
  %s5 = inlined_call_operand.hbm [shape: f32[1,256], index: 5, kind: output, shape index: {}]
  %s6 = sld [smem:[#allocation0]]
  $region53: #{tpu_custom_call.1} parent=0
    _
  %s8 = ssub.s32 1, %s6
  %s9 = scalar_select 0, %s8, %s6
  %10 = sst [smem:[#allocation2]] %s4
  $region1: #{tpu_custom_call.1} parent=0
    #allocation3 [shape = 'u8[1024]{0}', space=vmem, size = 0x400, scoped, tag = 'output window, operand 0']
    #allocation4 [shape = 's32[2]{0}', space=sflag, size = 0x8, scoped, tag = 'scoped memory for tpu_custom_call.1']
    %11 = vsyncpa [#allocation4], 0
    %s12 = scalar_lea.sflag [#allocation4], 1
    %13 = vsyncpa %s12, 0
    loop: start=0, step=1, limit=4
    $region2: #{tpu_custom_call.1} parent=1 // loop_pre_header
      _
    $region3: #{tpu_custom_call.1} parent=1 // loop_header
      %s15 = sphi 0, %s19
      %p16 = scmp.ge.s32.totalorder %s15, 4
      %s25 = sphi 0, %s27
      %s28 = sphi 0, %s25
      %s29 = sphi 0, %s28
      %s45 = sphi 0, %s29
      %s49 = sphi 0, %s49
      %s51 = sphi 0, %s49
      %s52 = sphi 0, %s51
      %s66 = sphi 0, %s52
      %s70 = sphi 0, %s70
      %s72 = sphi 0, %s70
      %s73 = sphi 0, %s72
      %s87 = sphi 0, %s73
      %s91 = sphi 0, %s91
      %s93 = sphi 0, %s91
      %s94 = sphi 0, %s93
      %s108 = sphi 0, %s94
      %s112 = sphi 0, %s112
      %s114 = sphi 0, %s112
      %s115 = sphi 0, %s114
      %s129 = sphi 0, %s115
      %s135 = sphi 0, %s137
      %s138 = sphi 0, %s135
      %s139 = sphi 0, %s138
      %s155 = sphi 0, %s139
    $region4: #{tpu_custom_call.1} parent=1 // loop_header_branch
      %18 = sbr.rel (%p16) target = $region8
    $region5: #{tpu_custom_call.1} parent=1 // loop_body
      %s20 = ssub.s32 %s15, 1
      %s21 = ssub.s32 %s15, 2
      %s22 = sadd.s32 %s15, 1
      %s23 = ssub.s32 %s15, %s22
      %p24 = scmp.eq.s32.totalorder %s23, 0
      %s26 = sadd.s32 %s25, 1
      %s27 = scalar_select %p24, %s25, %s26
      %p30 = pneg %p24
      %p31 = scmp.eq.s32.totalorder %s15, 1
      %p32 = por %p30, %p31
      %p33 = scmp.ne.s32.totalorder %s25, %s28
      %p34 = scmp.eq.s32.totalorder %s15, 0
      %p35 = por %p33, %p34
      %p36 = scmp.ne.s32.totalorder %s25, %s28
      %p37 = scmp.eq.s32.totalorder %s20, 1
      %p38 = por %p36, %p37
      %p39 = scmp.ne.s32.totalorder %s28, %s29
      %p40 = scmp.eq.s32.totalorder %s20, 0
      %p41 = por %p39, %p40
      %p42 = scmp.ne.s32.totalorder %s28, %s29
      %p43 = scmp.eq.s32.totalorder %s21, 1
      %p44 = por %p42, %p43
      %p46 = scmp.ne.s32.totalorder %s29, %s45
      %p47 = scmp.eq.s32.totalorder %s21, 0
      %p48 = por %p46, %p47
      %s50 = sadd.s32 %s49, 1
      %p53 = scmp.eq.s32.totalorder %s15, 1
      %p54 = scmp.ne.s32.totalorder %s49, %s51
      %p55 = scmp.eq.s32.totalorder %s15, 0
      %p56 = por %p54, %p55
      %p57 = scmp.ne.s32.totalorder %s49, %s51
      %p58 = scmp.eq.s32.totalorder %s20, 1
      %p59 = por %p57, %p58
      %p60 = scmp.ne.s32.totalorder %s51, %s52
      %p61 = scmp.eq.s32.totalorder %s20, 0
      %p62 = por %p60, %p61
      %p63 = scmp.ne.s32.totalorder %s51, %s52
      %p64 = scmp.eq.s32.totalorder %s21, 1
      %p65 = por %p63, %p64
      %p67 = scmp.ne.s32.totalorder %s52, %s66
      %p68 = scmp.eq.s32.totalorder %s21, 0
      %p69 = por %p67, %p68
      %s71 = sadd.s32 %s70, 1
      %p74 = scmp.eq.s32.totalorder %s15, 1
      %p75 = scmp.ne.s32.totalorder %s70, %s72
      %p76 = scmp.eq.s32.totalorder %s15, 0
      %p77 = por %p75, %p76
      %p78 = scmp.ne.s32.totalorder %s70, %s72
      %p79 = scmp.eq.s32.totalorder %s20, 1
      %p80 = por %p78, %p79
      %p81 = scmp.ne.s32.totalorder %s72, %s73
      %p82 = scmp.eq.s32.totalorder %s20, 0
      %p83 = por %p81, %p82
      %p84 = scmp.ne.s32.totalorder %s72, %s73
      %p85 = scmp.eq.s32.totalorder %s21, 1
      %p86 = por %p84, %p85
      %p88 = scmp.ne.s32.totalorder %s73, %s87
      %p89 = scmp.eq.s32.totalorder %s21, 0
      %p90 = por %p88, %p89
      %s92 = sadd.s32 %s91, 1
      %p95 = scmp.eq.s32.totalorder %s15, 1
      %p96 = scmp.ne.s32.totalorder %s91, %s93
      %p97 = scmp.eq.s32.totalorder %s15, 0
      %p98 = por %p96, %p97
      %p99 = scmp.ne.s32.totalorder %s91, %s93
      %p100 = scmp.eq.s32.totalorder %s20, 1
      %p101 = por %p99, %p100
      %p102 = scmp.ne.s32.totalorder %s93, %s94
      %p103 = scmp.eq.s32.totalorder %s20, 0
      %p104 = por %p102, %p103
      %p105 = scmp.ne.s32.totalorder %s93, %s94
      %p106 = scmp.eq.s32.totalorder %s21, 1
      %p107 = por %p105, %p106
      %p109 = scmp.ne.s32.totalorder %s94, %s108
      %p110 = scmp.eq.s32.totalorder %s21, 0
      %p111 = por %p109, %p110
      %s113 = sadd.s32 %s112, 1
      %p116 = scmp.eq.s32.totalorder %s15, 1
      %p117 = scmp.ne.s32.totalorder %s112, %s114
      %p118 = scmp.eq.s32.totalorder %s15, 0
      %p119 = por %p117, %p118
      %p120 = scmp.ne.s32.totalorder %s112, %s114
      %p121 = scmp.eq.s32.totalorder %s20, 1
      %p122 = por %p120, %p121
      %p123 = scmp.ne.s32.totalorder %s114, %s115
      %p124 = scmp.eq.s32.totalorder %s20, 0
      %p125 = por %p123, %p124
      %p126 = scmp.ne.s32.totalorder %s114, %s115
      %p127 = scmp.eq.s32.totalorder %s21, 1
      %p128 = por %p126, %p127
      %p130 = scmp.ne.s32.totalorder %s115, %s129
      %p131 = scmp.eq.s32.totalorder %s21, 0
      %p132 = por %p130, %p131
      %s133 = ssub.s32 %s15, %s22
      %p134 = scmp.eq.s32.totalorder %s133, 0
      %s136 = sadd.s32 %s135, 1
      %s137 = scalar_select %p134, %s135, %s136
      %p140 = pneg %p134
      %p141 = scmp.eq.s32.totalorder %s15, 1
      %p142 = por %p140, %p141
      %p143 = scmp.ne.s32.totalorder %s135, %s138
      %p144 = scmp.eq.s32.totalorder %s15, 0
      %p145 = por %p143, %p144
      %p146 = scmp.ne.s32.totalorder %s135, %s138
      %p147 = scmp.eq.s32.totalorder %s20, 1
      %p148 = por %p146, %p147
      %p149 = scmp.ne.s32.totalorder %s138, %s139
      %p150 = scmp.eq.s32.totalorder %s20, 0
      %p151 = por %p149, %p150
      %p152 = scmp.ne.s32.totalorder %s138, %s139
      %p153 = scmp.eq.s32.totalorder %s21, 1
      %p154 = por %p152, %p153
      %p156 = scmp.ne.s32.totalorder %s139, %s155
      %p157 = scmp.eq.s32.totalorder %s21, 0
      %p158 = por %p156, %p157
      %p159 = scmp.le.s32.totalorder 1, %s15
      %p160 = scmp.lt.s32.totalorder %s15, 3
      %p161 = pnand %p159, %p160
      %p162 = pneg %p161
      // Predicated region
      $region9: #{tpu_custom_call.1} parent=5 // pred_check
        _
      $region10: #{tpu_custom_call.1} parent=5 // pred_check_branch
        %164 = sbr.rel (%p161) target = $region12
      $region11: #{tpu_custom_call.1} parent=5 // pred_region
        %s165 = ssub.s32 %s15, 1
        // Predicated region
        $region13: #{tpu_custom_call.1} parent=11 // pred_check
          %p166 = pneg %p62
        $region14: #{tpu_custom_call.1} parent=11 // pred_check_branch
          %168 = sbr.rel (%p166) target = $region16
        $region15: #{tpu_custom_call.1} parent=11 // pred_region
          _
        $region16: #{tpu_custom_call.1} parent=11 // pred_fallthru
          _
        // Predicated region
        $region17: #{tpu_custom_call.1} parent=11 // pred_check
          %p169 = pneg %p83
        $region18: #{tpu_custom_call.1} parent=11 // pred_check_branch
          %171 = sbr.rel (%p169) target = $region20
        $region19: #{tpu_custom_call.1} parent=11 // pred_region
          _
        $region20: #{tpu_custom_call.1} parent=11 // pred_fallthru
          _
        // Predicated region
        $region21: #{tpu_custom_call.1} parent=11 // pred_check
          %p172 = pneg %p104
        $region22: #{tpu_custom_call.1} parent=11 // pred_check_branch
          %174 = sbr.rel (%p172) target = $region24
        $region23: #{tpu_custom_call.1} parent=11 // pred_region
          _
        $region24: #{tpu_custom_call.1} parent=11 // pred_fallthru
          _
        // Predicated region
        $region25: #{tpu_custom_call.1} parent=11 // pred_check
          %p175 = pneg %p125
        $region26: #{tpu_custom_call.1} parent=11 // pred_check_branch
          %177 = sbr.rel (%p175) target = $region28
        $region27: #{tpu_custom_call.1} parent=11 // pred_region
          _
        $region28: #{tpu_custom_call.1} parent=11 // pred_fallthru
          _
      $region12: #{tpu_custom_call.1} parent=5 // pred_fallthru
        _
      %p178 = scmp.lt.s32.totalorder %s15, 2
      // Predicated region
      $region29: #{tpu_custom_call.1} parent=5 // pred_check
        %p179 = pneg %p178
      $region30: #{tpu_custom_call.1} parent=5 // pred_check_branch
        %181 = sbr.rel (%p179) target = $region32
      $region31: #{tpu_custom_call.1} parent=5 // pred_region
        // Predicated region
        $region33: #{tpu_custom_call.1} parent=31 // pred_check
          %p182 = pneg %p35
        $region34: #{tpu_custom_call.1} parent=31 // pred_check_branch
          %184 = sbr.rel (%p182) target = $region36
        $region35: #{tpu_custom_call.1} parent=31 // pred_region
          %s185 = smul.u32 16, %s15
          %p186 = scmp.lt.s32.totalorder %s185, 31
          %s187 = scalar_select %p186, %s185, 31
          %s188 = smul.addr %s187, 8
          %s189 = scalar_lea.vmem %s0, %s188
          %s190 = smul.u32 16, %s15
        $region36: #{tpu_custom_call.1} parent=31 // pred_fallthru
          _
      $region32: #{tpu_custom_call.1} parent=5 // pred_fallthru
        _
      %p191 = scmp.le.s32.totalorder 1, %s15
      %p192 = scmp.lt.s32.totalorder %s15, 3
      %p193 = pnand %p191, %p192
      %p194 = pneg %p193
      // Predicated region
      $region37: #{tpu_custom_call.1} parent=5 // pred_check
        _
      $region38: #{tpu_custom_call.1} parent=5 // pred_check_branch
        %196 = sbr.rel (%p193) target = $region40
      $region39: #{tpu_custom_call.1} parent=5 // pred_region
        %s197 = ssub.s32 %s15, 1
        %s198 = smul.u32 16, %s20
        %p199 = scmp.lt.s32.totalorder %s198, 31
        %s200 = scalar_select %p199, %s198, 31
        %s201 = smul.addr %s200, 8
        %s202 = scalar_lea.vmem %s0, %s201
        %p203 = pneg %p41
        %p204 = pneg %p38
        %p205 = pneg %p62
        %p206 = pneg %p59
        %p207 = pneg %p83
        %p208 = pneg %p80
        %p209 = pneg %p104
        %p210 = pneg %p101
        %p211 = pneg %p125
        %p212 = pneg %p122
        %p213 = pneg %p151
        %p214 = pneg %p148
        %s215 = sand.u32 %s138, 1
        %s216 = scalar_lea.sflag [#allocation4], %s215
        %s217 = sand.u32 %s138, 1
        %s218 = scalar_lea.vmem [#allocation3], %s217
        %s219 = smul.u32 16, %s20
        %p220 = scmp.lt.s32.totalorder %s219, 31
        %s221 = scalar_select %p220, %s219, 31
        %s222 = smul.addr %s221, 8
        %s223 = scalar_lea.vmem %s0, %s222
        %s224 = smul.u32 16, %s20
        %v226 = vld [vmem:[%s223] sm:$0xff]
        %v227 = vld [vmem:[%s223 + $0x8] sm:$0xff]
        %v228 = vld [vmem:[%s223 + $0x10] sm:$0xff]
        %v229 = vld [vmem:[%s223 + $0x18] sm:$0xff]
        %v230 = vld [vmem:[%s223 + $0x20] sm:$0xff]
        %v231 = vld [vmem:[%s223 + $0x28] sm:$0xff]
        %v232 = vld [vmem:[%s223 + $0x30] sm:$0xff]
        %v233 = vld [vmem:[%s223 + $0x38] sm:$0xff]
        %v234 = vld [vmem:[%s223 + $0x40] sm:$0xff]
        %v235 = vld [vmem:[%s223 + $0x48] sm:$0xff]
        %v236 = vld [vmem:[%s223 + $0x50] sm:$0xff]
        %v237 = vld [vmem:[%s223 + $0x58] sm:$0xff]
        %v238 = vld [vmem:[%s223 + $0x60] sm:$0xff]
        %v239 = vld [vmem:[%s223 + $0x68] sm:$0xff]
        %v240 = vld [vmem:[%s223 + $0x70] sm:$0xff]
        %v241 = vld [vmem:[%s223 + $0x78] sm:$0xff]
        %v242 = vpack.c.bf16 %v227, %v226
        %v243 = vpack.c.bf16 %v229, %v228
        %v244 = vpack.c.bf16 %v231, %v230
        %v245 = vpack.c.bf16 %v233, %v232
        %v246 = vpack.c.bf16 %v235, %v234
        %v247 = vpack.c.bf16 %v237, %v236
        %v248 = vpack.c.bf16 %v239, %v238
        %v249 = vpack.c.bf16 %v241, %v240
        %v250 = vld [vmem:[%s1] sm:$0xf]
        %v251 = vld [vmem:[%s1 + $0x4] sm:$0xf]
        %v252 = vld [vmem:[%s2] sm:$0xff]
        %v253 = vld [vmem:[%s2 + $0x8] sm:$0xff]
        %255 = vset.pattern.permute.xlu0 0
        %256 = vperm.xlu0 %255, %v252
        %v257 = vpop.permute.xlu0 %256
        %260 = vset.pattern.permute.xlu0 0
        %261 = vperm.xlu0 %260, %v253
        %v262 = vpop.permute.xlu0 %261
        %v266 = vunpack.c.l.b16 %v250
        %v267 = vunpack.c.l.b16 %v251
        %v268 = vpack.c.b16 %v267, %v266
        %vm269 = vcmask 261120
        %v271 = vsel %vm269, %v268, 0
        %v274 = vsel %vm269, %v242, 0
        %v277 = vsel %vm269, %v243, 0
        %v280 = vsel %vm269, %v244, 0
        %v283 = vsel %vm269, %v245, 0
        %v286 = vsel %vm269, %v246, 0
        %v289 = vsel %vm269, %v247, 0
        %v292 = vsel %vm269, %v248, 0
        %v295 = vsel %vm269, %v249, 0
        %297 = vmatprep.subr.bf16.mxu0 0
        %298 = vmatpush1.bf16.xpose.msra.mxu0 %v295
        %299 = vmatprep.subr.bf16.mxu0 0
        %300 = vmatpush1.bf16.xpose.msra.mxu0 %v292
        %301 = vmatprep.subr.bf16.mxu0 0
        %302 = vmatpush1.bf16.xpose.msra.mxu0 %v289
        %303 = vmatprep.subr.bf16.mxu0 0
        %304 = vmatpush1.bf16.xpose.msra.mxu0 %v286
        %305 = vmatprep.subr.bf16.mxu0 0
        %306 = vmatpush1.bf16.xpose.msra.mxu0 %v283
        %307 = vmatprep.subr.bf16.mxu0 0
        %308 = vmatpush1.bf16.xpose.msra.mxu0 %v280
        %309 = vmatprep.subr.bf16.mxu0 0
        %310 = vmatpush1.bf16.xpose.msra.mxu0 %v277
        %311 = vmatprep.subr.bf16.mxu0 0
        %312 = vmatpush1.bf16.xpose.msra.mxu0 %v274
        %313 = vmatprep.subr.bf16.mxu0 0
        %314 = vmatpush2.bf16.xpose.msra.mxu0 0
        %315 = vmatprep.subr.bf16.mxu0 0
        %316 = vmatpush2.bf16.xpose.msra.mxu0 0
        %317 = vmatprep.subr.bf16.mxu0 0
        %318 = vmatpush2.bf16.xpose.msra.mxu0 0
        %319 = vmatprep.subr.bf16.mxu0 0
        %320 = vmatpush2.bf16.xpose.msra.mxu0 0
        %321 = vmatprep.subr.bf16.mxu0 0
        %322 = vmatpush2.bf16.xpose.msra.mxu0 0
        %323 = vmatprep.subr.bf16.mxu0 0
        %324 = vmatpush2.bf16.xpose.msra.mxu0 0
        %325 = vmatprep.subr.bf16.mxu0 0
        %326 = vmatpush2.bf16.xpose.msra.mxu0 0
        %327 = vmatprep.subr.bf16.mxu0 0
        %328 = vmatpush2.bf16.xpose.msra.mxu0 0
        %329 = vmatprep.mubr.bf16.mxu0 0
        %330 = vmatmul.mubr.bf16.gmra.mxu0 %v271
        %v331 = vpop.f32.mrf.mxu0
        %v332 = vadd.f32 %v257, %v331
        %v333 = vpop.f32.mrf.mxu0
        %v334 = vpop.f32.mrf.mxu0
        %v335 = vadd.f32 %v262, %v334
        %v336 = vpop.f32.mrf.mxu0
        %337 = vdwg.mxu0
        %v338 = vmax.f32 %v332, 0.0
        %v339 = vmax.f32 %v335, 0.0
        %v340 = vld [vmem:[%s3] sm:$0xff]
        %v341 = vld [vmem:[%s3 + $0x8] sm:$0xff]
        %343 = vset.pattern.permute.xlu0 0
        %344 = vperm.xlu0 %343, %v340
        %v345 = vpop.permute.xlu0 %344
        %348 = vset.pattern.permute.xlu0 0
        %349 = vperm.xlu0 %348, %v341
        %v350 = vpop.permute.xlu0 %349
        %v352 = vmul.f32 %v338, %v345
        %v353 = vmul.f32 %v339, %v350
        %v354 = vadd.f32 %v352, %v353
        %v355 = vrot.slane %v354, 4
        %v356 = vadd.f32 %v354, %v355
        %v357 = vrot.slane %v356, 2
        %v358 = vadd.f32 %v356, %v357
        %v359 = vrot.slane %v358, 1
        %v360 = vadd.f32 %v358, %v359
        %s361 = sld [smem:[#allocation2]]
        %v362 = vstv %s361
        %v363 = vadd.f32 %v360, %v362
        %v364 = vand.u32 2147483647, %v363
        %v365 = vsub.f32 0.0, %v364
        %v366 = vmul.f32 %v365, 1.442695
        %v367 = vpow.pop %v366
        %vm368 = vcmp.ge.f32.partialorder %v363, 0.0
        %v369 = vadd.f32 %v367, 1.0
        %v370 = vrcp.pop %v369
        %v371 = vmul.f32 1.0, %v370
        %v372 = vmul.f32 %v367, %v370
        %v373 = vsel %vm368, %v371, %v372
        %374 = vst [vmem:[%s218] sm:$0x1] %v373
        %s375 = sand.u32 %s138, 1
        %s376 = scalar_lea.sflag [#allocation4], %s375
        %s377 = sand.u32 %s138, 1
        %s378 = scalar_lea.vmem [#allocation3], %s377
        // Predicated region
        $region41: #{tpu_custom_call.1} parent=39 // pred_check
          %p379 = pneg %p148
        $region42: #{tpu_custom_call.1} parent=39 // pred_check_branch
          %381 = sbr.rel (%p379) target = $region44
        $region43: #{tpu_custom_call.1} parent=39 // pred_region
          %s383 = ssub.s32 16, 16
          %384 = vsyncadd %s376, %s383
          %s385 = smul.addr %s20, 16
          %s386 = scalar_lea.hbm %s5, %s385
          %s388 = sshll.u32 %s378, 4
          %s389 = int_to_ptr.vmem [resolvable:$true] %s388
          %391 = dma.vmem_to_hbm [thread:$0]  %s389, 16, %s386, %s376
        $region44: #{tpu_custom_call.1} parent=39 // pred_fallthru
          _
      $region40: #{tpu_custom_call.1} parent=5 // pred_fallthru
        _
      %p392 = scmp.le.s32.totalorder 2, %s15
      // Predicated region
      $region45: #{tpu_custom_call.1} parent=5 // pred_check
        %p393 = pneg %p392
      $region46: #{tpu_custom_call.1} parent=5 // pred_check_branch
        %395 = sbr.rel (%p393) target = $region48
      $region47: #{tpu_custom_call.1} parent=5 // pred_region
        %s396 = ssub.s32 %s15, 2
        // Predicated region
        $region49: #{tpu_custom_call.1} parent=47 // pred_check
          %p397 = pneg %p154
        $region50: #{tpu_custom_call.1} parent=47 // pred_check_branch
          %399 = sbr.rel (%p397) target = $region52
        $region51: #{tpu_custom_call.1} parent=47 // pred_region
          %s400 = sand.u32 %s139, 1
          %s401 = scalar_lea.sflag [#allocation4], %s400
          %s402 = sand.u32 %s139, 1
          %s403 = scalar_lea.vmem [#allocation3], %s402
          %404 = dma.done %s401, 16
        $region52: #{tpu_custom_call.1} parent=47 // pred_fallthru
          _
      $region48: #{tpu_custom_call.1} parent=5 // pred_fallthru
        _
    $region6: #{tpu_custom_call.1} parent=1 // loop_footer
      %s19 = sadd.s32 1, %s15
    $region7: #{tpu_custom_call.1} parent=1 // loop_footer_branch
      %14 = sbr.rel target = $region3
    $region8: #{tpu_custom_call.1} parent=1 // loop_exit
      _
    %405 = vsyncpa [#allocation4], 1
    %s406 = scalar_lea.sflag [#allocation4], 1
    %407 = vsyncpa %s406, 1

</llo_original>
